<compile_context>
chip_gen: v6e
topology: v6e:2x2x1
jax: 0.10.0
libtpu: 0.0.40
codegen_flags: <defaults>
</compile_context>

<pallas_src>
import functools

import jax
import jax.numpy as jnp
from jax.experimental import pallas as pl
from jax.experimental.pallas import tpu as pltpu


# Chunking policy for the HBM->HBM streaming copy: at most 4 concurrent DMAs,
# each at least ~1 MiB (below that a single descriptor is strictly better).
_MAX_CHUNKS = 4
_MIN_CHUNK_BYTES = 1 << 20  # 1 MiB


def _row_splits(n_rows: int, row_bytes: int):
    """Static (start, size) row ranges for 1..4 concurrent DMA chunks."""
    total_bytes = n_rows * row_bytes
    n_chunks = int(max(1, min(_MAX_CHUNKS, total_bytes // _MIN_CHUNK_BYTES, n_rows)))
    base, rem = divmod(n_rows, n_chunks)
    splits, start = [], 0
    for i in range(n_chunks):
        size = base + (1 if i < rem else 0)
        splits.append((start, size))
        start += size
    return tuple(splits)


def _dma_copy_kernel(row_splits, n_rows, x_ref, o_ref, sems):
    """Raw streaming copy: issue all chunk DMAs (src -> dst in place), then wait.

    x_ref / o_ref are un-tiled refs (memory_space=pl.ANY, i.e. left in HBM);
    the TensorCore does no vld/vst work — the DMA engines move the bytes.
    row_splits are static Python ints, so all slices are static.
    """
    copies = []
    for i, (start, size) in enumerate(row_splits):
        if start == 0 and size == n_rows:
            src, dst = x_ref, o_ref  # full-array copy, no slicing needed
        else:
            src = x_ref.at[pl.ds(start, size)]
            dst = o_ref.at[pl.ds(start, size)]
        cp = pltpu.make_async_copy(src, dst, sems.at[i])
        cp.start()
        copies.append(cp)
    for cp in copies:
        cp.wait()


def video_embedding_forward(
    images: jax.Array,
    *,
    force_pallas_copy: bool = False,
    donate: bool = False,
) -> jax.Array:
    """VideoEmbeddingVisionTower.forward (default, video-embedding-only path).

    The module's forward is a literal identity, so by default this returns
    `images` untouched (free in XLA).  Set force_pallas_copy=True only when an
    explicit on-device materialization / kernel boundary is required; in that
    case a chunked HBM->HBM DMA copy runs (no VMEM staging).

    donate=True additionally aliases the input buffer to the output
    (input_output_aliases={0: 0}).  NOTE: the copy still executes (pallas_call
    is an opaque custom call); only the output allocation is elided, and the
    caller's `images` buffer is invalidated under donation semantics.  Leave
    donate=False unless the caller actually donates `images`.
    """
    if not force_pallas_copy or images.size == 0:
        # Zero-cost identity — exactly what the PyTorch module does.
        return images

    orig_shape = images.shape
    # Lane-dense 2D view (rows of the embedding width).  All supported widths
    # (768, 1408, 1536, 2176) are multiples of 128; the DMA itself is a
    # contiguous copy, so any fallback shape is still correct.
    if images.ndim >= 2:
        width = orig_shape[-1]
        n_rows = images.size // width
    else:
        width, n_rows = images.size, 1
    x2d = images.reshape(n_rows, width)

    row_bytes = width * x2d.dtype.itemsize
    splits = _row_splits(n_rows, row_bytes)
    n_chunks = len(splits)
    nbytes = images.size * images.dtype.itemsize

    out2d = pl.pallas_call(
        functools.partial(_dma_copy_kernel, splits, n_rows),
        out_shape=jax.ShapeDtypeStruct((n_rows, width), x2d.dtype),
        in_specs=[pl.BlockSpec(memory_space=pl.ANY)],
        out_specs=pl.BlockSpec(memory_space=pl.ANY),
        scratch_shapes=[pltpu.SemaphoreType.DMA((n_chunks,))],
        input_output_aliases={0: 0} if donate else {},
        cost_estimate=pl.CostEstimate(
            flops=0, transcendentals=0, bytes_accessed=2 * nbytes
        ),
    )(x2d)
    return out2d.reshape(orig_shape)


class VideoEmbeddingVisionTowerJAX:
    """JAX/Pallas mirror of VideoEmbeddingVisionTower (video-embedding-only path)."""

    def __init__(self, vision_tower: str):
        self.vision_tower_name = vision_tower
        self.is_loaded = True
        self.use_vision_encoder = "_with_" in vision_tower
        if self.use_vision_encoder:
            # TODO(synk): '_with_' branch requires pretrained SigLIP ViT; not translatable.
            raise NotImplementedError(
                "Image-encoder branch requires an external pretrained SigLIP tower."
            )
        if "concat_global" in vision_tower:
            self._hidden_size = 768 * 2
        elif "concat_patch" in vision_tower:
            self._hidden_size = 768 + 1408
        elif "internVideo2_global" in vision_tower or "videoMAE" in vision_tower:
            self._hidden_size = 768
        elif "internVideo2_patch" in vision_tower:
            self._hidden_size = 1408
        else:
            self._hidden_size = 768

    def __call__(self, images: jax.Array, *, force_pallas_copy: bool = False) -> jax.Array:
        # Default branch of the PyTorch forward is identity; by default we do the
        # same (zero cost).  force_pallas_copy=True routes through the DMA kernel.
        return video_embedding_forward(images, force_pallas_copy=force_pallas_copy)

    @property
    def hidden_size(self):
        return self._hidden_size

    @property
    def num_patches_per_side(self):
        return 14

    @property
    def num_patches(self):
        return 14

    @property
    def image_size(self):
        return 14


if __name__ == "__main__":
    key = jax.random.PRNGKey(0)
    tower = VideoEmbeddingVisionTowerJAX("video_embedding_videoMAE_global")
    assert tower.hidden_size == 768

    # --- Test 1: small shape (B=2, T=8, H=768), single-chunk DMA copy. -------
    B, T, H = 2, 8, 768
    images = jax.random.normal(key, (B, T, H), dtype=jnp.float32)

    # Fast path (default): literal identity, no kernel.
    out_fast = tower(images)
    assert out_fast.shape == (B, T, H)
    assert bool(jnp.array_equal(out_fast, images))

    # Kernel path: explicit on-device copy via HBM->HBM DMA.
    out = jax.block_until_ready(tower(images, force_pallas_copy=True))
    assert out.shape == (B, T, H) and out.dtype == jnp.float32
    assert bool(jnp.array_equal(out, images))

    # --- Test 2: larger token count -> multi-chunk DMA path, non-divisible R. --
    key2 = jax.random.fold_in(key, 1)
    images2 = jax.random.normal(key2, (2, 1023, 768), dtype=jnp.float32)  # ~6 MiB
    out2 = jax.block_until_ready(
        video_embedding_forward(images2, force_pallas_copy=True)
    )
    assert out2.shape == images2.shape
    assert bool(jnp.array_equal(out2, images2))

    # --- Test 3: bf16 embeddings (dtype-agnostic raw copy). -------------------
    images3 = jax.random.normal(key2, (2, 8, 768), dtype=jnp.float32).astype(jnp.bfloat16)
    out3 = jax.block_until_ready(
        video_embedding_forward(images3, force_pallas_copy=True)
    )
    assert out3.dtype == jnp.bfloat16
    assert bool(jnp.array_equal(out3, images3))

    print("KERNEL_OK")
</pallas_src>

<mosaic_0001>
module attributes {stable_mosaic.version = 11 : i64} {
  func.func @_dma_copy_kernel(%arg0: memref<16x768xf32, #tpu.memory_space<any>>, %arg1: memref<16x768xf32, #tpu.memory_space<any>>, %arg2: memref<1x!tpu.dma_semaphore, #tpu.memory_space<semaphore_mem>>) attributes {dimension_semantics = [], scalar_prefetch = 0 : i64, scratch_operands = 1 : i64, tpu.core_type = #tpu.core_type<tc>} {
    %c0_i32 = arith.constant 0 : i32
    %0 = tpu.memref_slice %arg2[%c0_i32] : memref<1x!tpu.dma_semaphore, #tpu.memory_space<semaphore_mem>> -> memref<1x!tpu.dma_semaphore, #tpu.memory_space<semaphore_mem>>
    %1 = tpu.memref_squeeze %0 : memref<1x!tpu.dma_semaphore, #tpu.memory_space<semaphore_mem>> -> memref<!tpu.dma_semaphore, #tpu.memory_space<semaphore_mem>>
    tpu.enqueue_dma source(%arg0 : memref<16x768xf32, #tpu.memory_space<any>>) target(%arg1 : memref<16x768xf32, #tpu.memory_space<any>>) target_semaphore(%1 : memref<!tpu.dma_semaphore, #tpu.memory_space<semaphore_mem>>)
    %c0_i32_0 = arith.constant 0 : i32
    %2 = tpu.memref_slice %arg2[%c0_i32_0] : memref<1x!tpu.dma_semaphore, #tpu.memory_space<semaphore_mem>> -> memref<1x!tpu.dma_semaphore, #tpu.memory_space<semaphore_mem>>
    %3 = tpu.memref_squeeze %2 : memref<1x!tpu.dma_semaphore, #tpu.memory_space<semaphore_mem>> -> memref<!tpu.dma_semaphore, #tpu.memory_space<semaphore_mem>>
    tpu.wait_dma2 semaphore(%3 : memref<!tpu.dma_semaphore, #tpu.memory_space<semaphore_mem>>) src(%arg0 : memref<16x768xf32, #tpu.memory_space<any>>) dst(%arg1 : memref<16x768xf32, #tpu.memory_space<any>>)
    return
  }
}

</mosaic_0001>

<llo_original>
// kernel: tpu_custom_call.1
$region0: #{tpu_custom_call.1}
  #allocation0 [shape = 'u32[]', space=smem, size = 0x4, offset = 0x4, fixed_abs, tag = 'smem constant byte address 0x4 - core index']
  #allocation1 [shape = 'u32[144,128]{1,0:T(1,128)}', space=vmem, size = 0x12000, scoped, tag = 'internal scratch']
  #allocation2 [shape = 's32[1]{0}', space=sflag, size = 0x4, scoped, tag = 'scratch operand']
  #allocation3 [shape = 's32[]', space=sflag, size = 0x4, offset = 0, fixed_abs, tag = 'sflag constant byte address 0x0 - dummy sync flag']
  #allocation4 [shape = 'u32[0]{0}', space=smem, size = 0, offset = 0, fixed_abs, tag = 'smem constant byte address 0x0 - null']
  %s0 = inlined_call_operand.hbm [shape: f32[16,768], index: 0, kind: input, shape index: {}]
  %s1 = inlined_call_operand.hbm [shape: f32[16,768], index: 1, kind: output, shape index: {}]
  %s2 = sld [smem:[#allocation0]]
  $region2: #{tpu_custom_call.1} parent=0
    _
  %s4 = ssub.s32 1, %s2
  %s5 = scalar_select 0, %s4, %s2
  %s7 = sshll.u32 1, 14
  %s8 = sxor.u32 4294967295, %s7
  %12 = dma.general %s0, 1536, %s1, [#allocation2], 131072, [#allocation4], 0, 0
  %s13 = smul.u32 8, 2
  %s14 = smul.u32 %s13, 6
  %s15 = sshll.u32 %s14, 4
  %16 = dma.done [#allocation2], %s15
  %17 = vsyncmov [#allocation2]
  %s18 = vpop.sfrf %17
  %p19 = scmp.eq.s32.totalorder %s18, 0
  %p20 = pneg %p19
  %22 = shalt.err (%p20)

</llo_original>
